<compile_context>
chip_gen: v5e
topology: v5e:2x2
jax: 0.10.0
libtpu: 0.0.40
codegen_flags: <defaults>
</compile_context>

<pallas_src>
import functools

import jax
import jax.numpy as jnp
from jax.experimental import pallas as pl
from jax.experimental.pallas import tpu as pltpu


def _round_up(x, m):
    return (x + m - 1) // m * m


def _pick_batch_tile(B):
    """Batch tile: multiple of 8 (ragged tail OK) or == B; aim for >=2 tiles."""
    if B < 8:
        return B                       # block dim == full array dim (always legal)
    half = ((B + 1) // 2) // 8 * 8     # >=2 batch tiles when possible (v7x megacore)
    return max(8, min(64, half))


# ---------------------------------------------------------------------------
# Fused kernel: masked mean pool + score matmul + cross-entropy
# ---------------------------------------------------------------------------
def _pool_score_ce_kernel(h_ref, len_ref, lab_ref, w_ref,
                          logits_ref, loss_ref, acc_ref, *, num_labels):
    """One (batch-tile i, time-tile j) grid step.

    h_ref     : (tt, tb, D)   hidden states, native seq-major layout (un-padded)
    len_ref   : (tb, 1)       int32 valid-token count per row
    lab_ref   : (tb, 1)       int32 labels (-100 = ignore / padded row)
    w_ref     : (D, L_pad)    score weight, transposed + zero-padded to 128 lanes
    logits_ref: (tb, L_pad)   f32 logits block (resident across time axis)
    loss_ref  : (tb, 1)       f32 per-row CE loss (resident across time axis)
    acc_ref   : (tb, D)       f32 masked-sum accumulator (scratch)
    """
    tt, tb, _ = h_ref.shape
    j = pl.program_id(1)

    @pl.when(j == 0)
    def _():
        acc_ref[...] = jnp.zeros_like(acc_ref)

    # Synthesize the padding mask in-kernel from per-row lengths.  The select
    # also zeroes the unspecified (out-of-bounds) part of ragged tail blocks,
    # since lengths are 0 for padded batch rows and <= T for real rows.
    lens = len_ref[...]                                              # (tb, 1)
    t_idx = j * tt + jax.lax.broadcasted_iota(jnp.int32, (tt, tb, 1), 0)
    valid_tok = t_idx < lens[None, :, :]                             # (tt, tb, 1)
    hm = jnp.where(valid_tok, h_ref[...], 0)                         # native dtype
    acc_ref[...] += jnp.sum(hm.astype(jnp.float32), axis=0)          # f32 accum

    @pl.when(j == pl.num_programs(1) - 1)
    def _():
        cnt = jnp.maximum(lens.astype(jnp.float32), 1e-9)            # (tb, 1)
        pooled = acc_ref[...] / cnt                                  # (tb, D) f32
        logits = jnp.dot(pooled, w_ref[...].astype(jnp.float32),
                         preferred_element_type=jnp.float32)         # (tb, L_pad)
        logits_ref[...] = logits.astype(logits_ref.dtype)

        # Fused cross-entropy: mask the zero-padded label lanes, honor
        # ignore_index=-100 (padded batch rows also carry -100).
        tb_, lpad = logits.shape
        lane = jax.lax.broadcasted_iota(jnp.int32, (tb_, lpad), 1)
        xv = jnp.where(lane < num_labels, logits, jnp.float32(-1e30))
        mx = jnp.max(xv, axis=-1, keepdims=True)
        lse = mx + jnp.log(jnp.sum(jnp.exp(xv - mx), axis=-1, keepdims=True))
        lbl = lab_ref[...]                                           # (tb, 1)
        picked = jnp.sum(jnp.where(lane == lbl, xv, 0.0),
                         axis=-1, keepdims=True)                     # (tb, 1)
        row_valid = lbl != -100
        loss_ref[...] = jnp.where(row_valid, lse - picked, 0.0)


# ---------------------------------------------------------------------------
# Module wrapper
# ---------------------------------------------------------------------------
class FxTAverageSingleInputWithPaddingPallas:
    """JAX/Pallas forward pass of FxTAverageSingleInputWithPadding (seq_cls).

    TODO(synk): the pretrained mem-transformer itself is not a Pallas kernel;
    `hidden_states` (T, B, d_model) is taken as an input, and `stats` /
    `boundary_loss` are passed through.
    """

    def __init__(self, num_labels, d_model, task="seq_cls", *, key=None,
                 param_dtype=jnp.float32):
        # TODO(synk): task='token_cls' branch (label truncation, per-token head)
        # is not implemented; only the seq_cls pooling path is translated.
        assert task == "seq_cls"
        self.num_labels = num_labels
        self.d_model = d_model
        self.task = task
        self.lane_pad = _round_up(max(num_labels, 1), 128)

        if key is None:
            key = jax.random.PRNGKey(0)
        lim = 1.0 / (d_model ** 0.5)
        w = jax.random.uniform(key, (d_model, num_labels), jnp.float32, -lim, lim)
        # Stored transposed (logits = pooled @ W) and zero-padded on the label
        # axis to a lane-dense multiple of 128.
        self.w_pad = jnp.pad(
            w, ((0, 0), (0, self.lane_pad - num_labels))).astype(param_dtype)

    def forward(self, hidden_states, attention_mask, labels,
                stats=None, boundary_loss=None):
        """hidden_states: (T, B, d_model); attention_mask: (B, T); labels: (B,)."""
        T, B, D = hidden_states.shape
        assert D == self.d_model
        L_pad = self.lane_pad
        dtype = hidden_states.dtype
        itemsize = jnp.dtype(dtype).itemsize

        # ---- tiling: no padding/copy of the big hidden tensor ----------------
        tb = _pick_batch_tile(B)
        grid_b = pl.cdiv(B, tb)
        B_ceil = grid_b * tb
        # ~4 MiB per hidden buffer (2 pipelined buffers) -> fits v7x's 64 MiB VMEM
        # with plenty of headroom; big enough for near-roofline HBM streaming.
        budget = 4 * 1024 * 1024
        tt = max(1, min(T, budget // max(1, tb * D * itemsize)))
        grid_t = pl.cdiv(T, tt)
        # TODO(synk): when B yields a single batch tile (B <= 8-ish), one v7x
        # TensorCore idles; a split time reduction + combine would fix that.

        # ---- tiny per-row side inputs (only these get padded) ----------------
        # TODO(synk): assumes the padding mask is a prefix mask (lengths = sum);
        # arbitrary "holey" masks would require streaming the mask itself.
        lengths = jnp.sum(attention_mask, axis=1).astype(jnp.int32)         # (B,)
        lens_p = jnp.zeros((B_ceil, 1), jnp.int32).at[:B, 0].set(lengths)
        labs_p = jnp.full((B_ceil, 1), -100, jnp.int32).at[:B, 0].set(
            labels.astype(jnp.int32))

        w = self.w_pad
        if w.dtype != dtype:
            w = w.astype(dtype)   # halve double-buffered weight footprint (bf16)

        # ---- explicit VMEM budget (v5e scoped default is only 16 MiB) --------
        hblk = tt * tb * D * itemsize
        wblk = D * L_pad * jnp.dtype(w.dtype).itemsize
        small = 6 * max(tb, 8) * 128 * 4                  # lens/labels/loss blocks
        need = 2 * hblk + 2 * wblk + small + 2 * tb * L_pad * 4 + tb * D * 4 \
            + (2 << 20)
        vmem_limit = int(min(50 * 2 ** 20, max(16 * 2 ** 20, need)))

        kernel = functools.partial(_pool_score_ce_kernel,
                                   num_labels=self.num_labels)
        logits_pad, per_row_loss = pl.pallas_call(
            kernel,
            out_shape=(jax.ShapeDtypeStruct((B_ceil, L_pad), jnp.float32),
                       jax.ShapeDtypeStruct((B_ceil, 1), jnp.float32)),
            grid_spec=pltpu.PrefetchScalarGridSpec(
                num_scalar_prefetch=0,
                grid=(grid_b, grid_t),
                in_specs=[
                    # hidden streamed un-padded, native (T, B, D) layout
                    pl.BlockSpec((tt, tb, D), lambda i, j: (j, i, 0)),
                    pl.BlockSpec((tb, 1), lambda i, j: (i, 0)),     # lengths
                    pl.BlockSpec((tb, 1), lambda i, j: (i, 0)),     # labels
                    pl.BlockSpec((D, L_pad), lambda i, j: (0, 0)),  # weight
                ],
                out_specs=[
                    pl.BlockSpec((tb, L_pad), lambda i, j: (i, 0)),  # logits
                    pl.BlockSpec((tb, 1), lambda i, j: (i, 0)),      # per-row CE
                ],
                scratch_shapes=[pltpu.VMEM((tb, D), jnp.float32)],
            ),
            compiler_params=pltpu.CompilerParams(
                dimension_semantics=("parallel", "arbitrary"),
                vmem_limit_bytes=vmem_limit),
        )(hidden_states, lens_p, labs_p, w)

        # CrossEntropyLoss(mean) over non-ignored rows (ignore_index = -100).
        n_valid = jnp.maximum(jnp.sum(labels != -100).astype(jnp.float32), 1.0)
        loss = jnp.sum(per_row_loss) / n_valid
        logits = logits_pad[:B, :self.num_labels]
        return loss, logits, stats, boundary_loss


# ---------------------------------------------------------------------------
# Pure-JAX reference (for correctness check)
# ---------------------------------------------------------------------------
def _reference(hidden, mask, labels, w_pad, num_labels):
    h = jnp.transpose(hidden, (1, 0, 2)).astype(jnp.float32)      # (B, T, D)
    m = mask.astype(jnp.float32)
    pooled = (h * m[:, :, None]).sum(1) / jnp.maximum(
        m.sum(1, keepdims=True), 1e-9)
    logits = pooled @ w_pad.astype(jnp.float32)[:, :num_labels]
    logp = jax.nn.log_softmax(logits, axis=-1)
    loss = -jnp.mean(jnp.take_along_axis(logp, labels[:, None], axis=-1))
    return loss, logits


if __name__ == "__main__":
    # Small shapes: seq T=8, batch B=2, d_model=32, num_labels=4.
    T, B, d_model, num_labels = 8, 2, 32, 4

    key = jax.random.PRNGKey(0)
    k_h, k_w, k_l = jax.random.split(key, 3)
    hidden = jax.random.normal(k_h, (T, B, d_model), jnp.float32)
    lengths = jnp.array([6, 4], dtype=jnp.int32)
    attention_mask = (jnp.arange(T)[None, :] < lengths[:, None]).astype(jnp.float32)
    labels = jax.random.randint(k_l, (B,), 0, num_labels)

    model = FxTAverageSingleInputWithPaddingPallas(
        num_labels=num_labels, d_model=d_model, task="seq_cls", key=k_w)

    loss, logits, stats, boundary_loss = model.forward(
        hidden, attention_mask, labels)
    jax.block_until_ready((loss, logits))

    ref_loss, ref_logits = _reference(
        hidden, attention_mask, labels, model.w_pad, num_labels)
    assert logits.shape == (B, num_labels)
    assert jnp.allclose(logits, ref_logits, atol=1e-4, rtol=1e-4)
    assert jnp.allclose(loss, ref_loss, atol=1e-4, rtol=1e-4)

    print("KERNEL_OK")
</pallas_src>

<mosaic_0001>
module attributes {stable_mosaic.version = 11 : i64} {
  func.func @_pool_score_ce_kernel(%arg0: i32, %arg1: i32, %arg2: memref<8x2x32xf32, #tpu.memory_space<vmem>>, %arg3: memref<2x1xi32, #tpu.memory_space<vmem>>, %arg4: memref<2x1xi32, #tpu.memory_space<vmem>>, %arg5: memref<32x128xf32, #tpu.memory_space<vmem>>, %arg6: memref<2x128xf32, #tpu.memory_space<vmem>>, %arg7: memref<2x1xf32, #tpu.memory_space<vmem>>, %arg8: memref<2x32xf32, #tpu.memory_space<vmem>>) attributes {dimension_semantics = [#tpu.dimension_semantics<parallel>, #tpu.dimension_semantics<arbitrary>], iteration_bounds = array<i64: 1, 1>, scalar_prefetch = 0 : i64, scratch_operands = 1 : i64, tpu.core_type = #tpu.core_type<tc>, window_params = [{transform_indices = @transform_0, window_bounds = array<i64: 8, 2, 32>}, {transform_indices = @transform_1, window_bounds = array<i64: 2, 1>}, {transform_indices = @transform_2, window_bounds = array<i64: 2, 1>}, {pipeline_mode = #tpu.pipeline_mode<synchronous>, transform_indices = @transform_3, window_bounds = array<i64: 32, 128>}, {transform_indices = @transform_4, window_bounds = array<i64: 2, 128>}, {transform_indices = @transform_5, window_bounds = array<i64: 2, 1>}]} {
    %c0_i32 = arith.constant 0 : i32
    %0 = arith.cmpi eq, %arg1, %c0_i32 : i32
    %1 = arith.extui %0 : i1 to i32
    %c0_i32_0 = arith.constant 0 : i32
    %2 = arith.cmpi ne, %1, %c0_i32_0 : i32
    scf.if %2 {
      %cst_12 = arith.constant 0.000000e+00 : f32
      %24 = vector.broadcast %cst_12 : f32 to vector<2x32xf32>
      %c0_13 = arith.constant 0 : index
      %c0_14 = arith.constant 0 : index
      %25 = vector.load %arg8[%c0_13, %c0_14] : memref<2x32xf32, #tpu.memory_space<vmem>>, vector<2x32xf32>
      tpu.vector_store %arg8[%c0_13, %c0_14], %24 {strides = array<i32>} : memref<2x32xf32, #tpu.memory_space<vmem>>, vector<2x32xf32>,
    } else {
    }
    %c0 = arith.constant 0 : index
    %c0_1 = arith.constant 0 : index
    %3 = vector.load %arg3[%c0, %c0_1] : memref<2x1xi32, #tpu.memory_space<vmem>>, vector<2x1xi32>
    %c8_i32 = arith.constant 8 : i32
    %4 = arith.muli %arg1, %c8_i32 : i32
    %5 = tpu.iota {dimensions = array<i32: 0>} : vector<8x2x1xi32>
    %6 = vector.broadcast %4 : i32 to vector<8x2x1xi32>
    %7 = arith.addi %6, %5 : vector<8x2x1xi32>
    %8 = vector.shape_cast %3 : vector<2x1xi32> to vector<1x2x1xi32>
    %9 = vector.broadcast %8 : vector<1x2x1xi32> to vector<8x2x1xi32>
    %10 = arith.cmpi slt, %7, %9 : vector<8x2x1xi32>
    %c0_2 = arith.constant 0 : index
    %c0_3 = arith.constant 0 : index
    %c0_4 = arith.constant 0 : index
    %11 = vector.load %arg2[%c0_2, %c0_3, %c0_4] : memref<8x2x32xf32, #tpu.memory_space<vmem>>, vector<8x2x32xf32>
    %c0_i32_5 = arith.constant 0 : i32
    %12 = arith.sitofp %c0_i32_5 : i32 to f32
    %13 = vector.shape_cast %10 : vector<8x2x1xi1> to vector<8x2x1xi1>
    %14 = vector.broadcast %13 : vector<8x2x1xi1> to vector<8x2x32xi1>
    %15 = vector.broadcast %12 : f32 to vector<8x2x32xf32>
    %16 = arith.select %14, %11, %15 : vector<8x2x32xi1>, vector<8x2x32xf32>
    %c0_6 = arith.constant 0 : index
    %c0_7 = arith.constant 0 : index
    %17 = vector.load %arg8[%c0_6, %c0_7] : memref<2x32xf32, #tpu.memory_space<vmem>>, vector<2x32xf32>
    %cst = arith.constant dense<0.000000e+00> : vector<2x32xf32>
    %18 = vector.multi_reduction <add>, %16, %cst [0] : vector<8x2x32xf32> to vector<2x32xf32>
    %19 = arith.addf %17, %18 : vector<2x32xf32>
    %c0_8 = arith.constant 0 : index
    %c0_9 = arith.constant 0 : index
    %20 = vector.load %arg8[%c0_8, %c0_9] : memref<2x32xf32, #tpu.memory_space<vmem>>, vector<2x32xf32>
    tpu.vector_store %arg8[%c0_8, %c0_9], %19 {strides = array<i32>} : memref<2x32xf32, #tpu.memory_space<vmem>>, vector<2x32xf32>,
    %c0_i32_10 = arith.constant 0 : i32
    %21 = arith.cmpi eq, %arg1, %c0_i32_10 : i32
    %22 = arith.extui %21 : i1 to i32
    %c0_i32_11 = arith.constant 0 : i32
    %23 = arith.cmpi ne, %22, %c0_i32_11 : i32
    scf.if %23 {
      %24 = arith.sitofp %3 : vector<2x1xi32> to vector<2x1xf32>
      %cst_12 = arith.constant 9.99999971E-10 : f32
      %25 = vector.broadcast %cst_12 : f32 to vector<2x1xf32>
      %26 = arith.maximumf %24, %25 : vector<2x1xf32>
      %c0_13 = arith.constant 0 : index
      %c0_14 = arith.constant 0 : index
      %27 = vector.load %arg8[%c0_13, %c0_14] : memref<2x32xf32, #tpu.memory_space<vmem>>, vector<2x32xf32>
      %28 = vector.broadcast %26 : vector<2x1xf32> to vector<2x32xf32>
      %29 = arith.divf %27, %28 : vector<2x32xf32>
      %c0_15 = arith.constant 0 : index
      %c0_16 = arith.constant 0 : index
      %30 = vector.load %arg5[%c0_15, %c0_16] : memref<32x128xf32, #tpu.memory_space<vmem>>, vector<32x128xf32>
      %cst_17 = arith.constant dense<0.000000e+00> : vector<2x128xf32>
      %31 = tpu.matmul %29, %30, %cst_17 {dimension_numbers = #tpu.dot_dimension_numbers<[1], [0], [0], [1], [0, 0, 1, 1], [], []>} : vector<2x32xf32>, vector<32x128xf32>, vector<2x128xf32> -> vector<2x128xf32>
      %c0_18 = arith.constant 0 : index
      %c0_19 = arith.constant 0 : index
      %32 = vector.load %arg6[%c0_18, %c0_19] : memref<2x128xf32, #tpu.memory_space<vmem>>, vector<2x128xf32>
      tpu.vector_store %arg6[%c0_18, %c0_19], %31 {strides = array<i32>} : memref<2x128xf32, #tpu.memory_space<vmem>>, vector<2x128xf32>,
      %33 = tpu.iota {dimensions = array<i32: 1>} : vector<2x128xi32>
      %c4_i32 = arith.constant 4 : i32
      %34 = vector.broadcast %c4_i32 : i32 to vector<2x128xi32>
      %35 = arith.cmpi slt, %33, %34 : vector<2x128xi32>
      %cst_20 = arith.constant -1.000000e+30 : f32
      %36 = vector.broadcast %cst_20 : f32 to vector<2x128xf32>
      %37 = arith.select %35, %31, %36 : vector<2x128xi1>, vector<2x128xf32>
      %cst_21 = arith.constant dense<0xFF800000> : vector<2xf32>
      %38 = vector.multi_reduction <maximumf>, %37, %cst_21 [1] : vector<2x128xf32> to vector<2xf32>
      %39 = vector.shape_cast %38 : vector<2xf32> to vector<2x1xf32>
      %40 = vector.broadcast %39 : vector<2x1xf32> to vector<2x128xf32>
      %41 = arith.subf %37, %40 : vector<2x128xf32>
      %42 = math.exp %41 : vector<2x128xf32>
      %cst_22 = arith.constant dense<0.000000e+00> : vector<2xf32>
      %43 = vector.multi_reduction <add>, %42, %cst_22 [1] : vector<2x128xf32> to vector<2xf32>
      %44 = vector.shape_cast %43 : vector<2xf32> to vector<2x1xf32>
      %45 = math.log %44 : vector<2x1xf32>
      %46 = arith.addf %39, %45 : vector<2x1xf32>
      %c0_23 = arith.constant 0 : index
      %c0_24 = arith.constant 0 : index
      %47 = vector.load %arg4[%c0_23, %c0_24] : memref<2x1xi32, #tpu.memory_space<vmem>>, vector<2x1xi32>
      %48 = vector.broadcast %47 : vector<2x1xi32> to vector<2x128xi32>
      %49 = arith.cmpi eq, %33, %48 : vector<2x128xi32>
      %cst_25 = arith.constant 0.000000e+00 : f32
      %50 = vector.broadcast %cst_25 : f32 to vector<2x128xf32>
      %51 = arith.select %49, %37, %50 : vector<2x128xi1>, vector<2x128xf32>
      %cst_26 = arith.constant dense<0.000000e+00> : vector<2xf32>
      %52 = vector.multi_reduction <add>, %51, %cst_26 [1] : vector<2x128xf32> to vector<2xf32>
      %53 = vector.shape_cast %52 : vector<2xf32> to vector<2x1xf32>
      %c-100_i32 = arith.constant -100 : i32
      %54 = vector.broadcast %c-100_i32 : i32 to vector<2x1xi32>
      %55 = arith.cmpi ne, %47, %54 : vector<2x1xi32>
      %56 = arith.subf %46, %53 : vector<2x1xf32>
      %cst_27 = arith.constant 0.000000e+00 : f32
      %57 = vector.broadcast %cst_27 : f32 to vector<2x1xf32>
      %58 = arith.select %55, %56, %57 : vector<2x1xi1>, vector<2x1xf32>
      %c0_28 = arith.constant 0 : index
      %c0_29 = arith.constant 0 : index
      %59 = vector.load %arg7[%c0_28, %c0_29] : memref<2x1xf32, #tpu.memory_space<vmem>>, vector<2x1xf32>
      tpu.vector_store %arg7[%c0_28, %c0_29], %58 {strides = array<i32>} : memref<2x1xf32, #tpu.memory_space<vmem>>, vector<2x1xf32>,
    } else {
    }
    return
  }
  func.func @transform_0(%arg0: i32, %arg1: i32) -> (i32, i32, i32) {
    %c0_i32 = arith.constant 0 : i32
    %c0_i32_0 = arith.constant 0 : i32
    return %arg1, %arg0, %c0_i32 : i32, i32, i32
  }
  func.func @transform_1(%arg0: i32, %arg1: i32) -> (i32, i32) {
    %c0_i32 = arith.constant 0 : i32
    %c0_i32_0 = arith.constant 0 : i32
    return %arg0, %c0_i32 : i32, i32
  }
  func.func @transform_2(%arg0: i32, %arg1: i32) -> (i32, i32) {
    %c0_i32 = arith.constant 0 : i32
    %c0_i32_0 = arith.constant 0 : i32
    return %arg0, %c0_i32 : i32, i32
  }
  func.func @transform_3(%arg0: i32, %arg1: i32) -> (i32, i32) {
    %c0_i32 = arith.constant 0 : i32
    %c0_i32_0 = arith.constant 0 : i32
    %c0_i32_1 = arith.constant 0 : i32
    return %c0_i32, %c0_i32_0 : i32, i32
  }
  func.func @transform_4(%arg0: i32, %arg1: i32) -> (i32, i32) {
    %c0_i32 = arith.constant 0 : i32
    %c0_i32_0 = arith.constant 0 : i32
    return %arg0, %c0_i32 : i32, i32
  }
  func.func @transform_5(%arg0: i32, %arg1: i32) -> (i32, i32) {
    %c0_i32 = arith.constant 0 : i32
    %c0_i32_0 = arith.constant 0 : i32
    return %arg0, %c0_i32 : i32, i32
  }
}

</mosaic_0001>

<llo_original>
// kernel: tpu_custom_call.1
$region0: #{tpu_custom_call.1}
  #allocation0 [shape = 'u32[]', space=smem, size = 0x4, offset = 0x4, fixed_abs, tag = 'smem constant byte address 0x4 - core index']
  #allocation1 [shape = 'u32[72,128]{1,0:T(1,128)}', space=vmem, size = 0x9000, scoped, tag = 'internal scratch']
  #allocation2 [shape = 'f32[2,32]{1,0:T(2,128)}', space=vmem, size = 0x400, scoped, tag = 'scratch operand']
  %s0 = inlined_call_operand.hbm [shape: f32[8,2,32], index: 0, kind: input, shape index: {}]
  %s1 = inlined_call_operand.vmem [shape: s32[2,1], index: 1, kind: input, shape index: {}]
  %s2 = inlined_call_operand.vmem [shape: s32[2,1], index: 2, kind: input, shape index: {}]
  %s3 = inlined_call_operand.hbm [shape: f32[32,128], index: 3, kind: input, shape index: {}]
  %s4 = inlined_call_operand.hbm [shape: f32[2,128], index: 4, kind: output, shape index: {0}]
  %s5 = inlined_call_operand.vmem [shape: f32[2,1], index: 5, kind: output, shape index: {1}]
  %6 = xla_tuple %s4, %s5
  %s7 = sld [smem:[#allocation0]]
  $region50: #{tpu_custom_call.1} parent=0
    _
  %s9 = ssub.s32 1, %s7
  %s10 = scalar_select 0, %s9, %s7
  $region1: #{tpu_custom_call.1} parent=0
    #allocation3 [shape = 'u8[8192]{0}', space=vmem, size = 0x2000, scoped, tag = 'input window, operand 0, single buffered']
    #allocation4 [shape = 's32[1]{0}', space=sflag, size = 0x4, scoped, tag = 'scoped memory for tpu_custom_call.1']
    #allocation5 [shape = 's32[1]{0}', space=sflag, size = 0x4, scoped, tag = 'scoped memory for tpu_custom_call.1']
    #allocation6 [shape = 'u8[16384]{0}', space=vmem, size = 0x4000, scoped, tag = 'input window, operand 3, single buffered']
    #allocation7 [shape = 's32[1]{0}', space=sflag, size = 0x4, scoped, tag = 'scoped memory for tpu_custom_call.1']
    #allocation8 [shape = 'u8[1024]{0}', space=vmem, size = 0x400, scoped, tag = 'output window, operand 0, single buffered']
    %11 = vsyncpa [#allocation4], 0
    %12 = vsyncpa [#allocation7], 0
    %13 = vsyncpa [#allocation5], 0
    // Predicated region
    $region2: #{tpu_custom_call.1} parent=1 // pred_check
      _
    $region3: #{tpu_custom_call.1} parent=1 // pred_check_branch
      %15 = sbr.rel (0) target = $region5
    $region4: #{tpu_custom_call.1} parent=1 // pred_region
      %17 = vsyncadd [#allocation4], 0
      %s18 = sshll.u32 %s0, 4
      %s19 = int_to_ptr.hbm [resolvable:$true] %s18
      %s20 = sshll.u32 [#allocation3], 4
      %s21 = int_to_ptr.vmem [resolvable:$true] %s20
      %26 = dma.hbm_to_vmem [thread:$0]  %s19, 256, %s21, [#allocation4], 32, 32, 2
    $region5: #{tpu_custom_call.1} parent=1 // pred_fallthru
      _
    // Predicated region
    $region6: #{tpu_custom_call.1} parent=1 // pred_check
      _
    $region7: #{tpu_custom_call.1} parent=1 // pred_check_branch
      %28 = sbr.rel (0) target = $region9
    $region8: #{tpu_custom_call.1} parent=1 // pred_region
      _
    $region9: #{tpu_custom_call.1} parent=1 // pred_fallthru
      _
    // Predicated region
    $region10: #{tpu_custom_call.1} parent=1 // pred_check
      _
    $region11: #{tpu_custom_call.1} parent=1 // pred_check_branch
      %30 = sbr.rel (0) target = $region13
    $region12: #{tpu_custom_call.1} parent=1 // pred_region
      _
    $region13: #{tpu_custom_call.1} parent=1 // pred_fallthru
      _
    // Predicated region
    $region14: #{tpu_custom_call.1} parent=1 // pred_check
      _
    $region15: #{tpu_custom_call.1} parent=1 // pred_check_branch
      %32 = sbr.rel (0) target = $region17
    $region16: #{tpu_custom_call.1} parent=1 // pred_region
      %34 = vsyncadd [#allocation7], 0
      %s35 = sshll.u32 %s3, 4
      %s36 = int_to_ptr.hbm [resolvable:$true] %s35
      %s37 = sshll.u32 [#allocation6], 4
      %s38 = int_to_ptr.vmem [resolvable:$true] %s37
      %43 = dma.hbm_to_vmem [thread:$0]  %s36, 512, %s38, [#allocation7], 128, 128, 8
    $region17: #{tpu_custom_call.1} parent=1 // pred_fallthru
      _
    // Predicated region
    $region18: #{tpu_custom_call.1} parent=1 // pred_check
      _
    $region19: #{tpu_custom_call.1} parent=1 // pred_check_branch
      %45 = sbr.rel (0) target = $region21
    $region20: #{tpu_custom_call.1} parent=1 // pred_region
      %47 = dma.done [#allocation4], 256
    $region21: #{tpu_custom_call.1} parent=1 // pred_fallthru
      _
    // Predicated region
    $region22: #{tpu_custom_call.1} parent=1 // pred_check
      _
    $region23: #{tpu_custom_call.1} parent=1 // pred_check_branch
      %49 = sbr.rel (0) target = $region25
    $region24: #{tpu_custom_call.1} parent=1 // pred_region
      %51 = dma.done [#allocation7], 512
    $region25: #{tpu_custom_call.1} parent=1 // pred_fallthru
      _
    %p52 = scmp.eq.s32.totalorder 0, 0
    // Predicated region
    $region26: #{tpu_custom_call.1} parent=1 // pred_check
      %p53 = pneg %p52
    $region27: #{tpu_custom_call.1} parent=1 // pred_check_branch
      %55 = sbr.rel (%p53) target = $region29
    $region28: #{tpu_custom_call.1} parent=1 // pred_region
      %vm56 = vcmask 254976
      %57 = vst.msk [vmem:[#allocation2] sm:$0x3] %vm56, 0.0
    $region29: #{tpu_custom_call.1} parent=1 // pred_fallthru
      _
    %v58 = vld [vmem:[%s1] sm:$0x3]
    %s59 = smul.u32 0, 8
    %v60 = vstv %s59
    %v61 = vadd.s32 %v60, 1
    %v62 = vadd.s32 %v60, 2
    %v63 = vadd.s32 %v60, 3
    %v64 = vadd.s32 %v60, 4
    %v65 = vadd.s32 %v60, 5
    %v66 = vadd.s32 %v60, 6
    %v67 = vadd.s32 %v60, 7
    %vm68 = vcmp.lt.s32.totalorder %v60, %v58
    %vm69 = vcmp.lt.s32.totalorder %v61, %v58
    %vm70 = vcmp.lt.s32.totalorder %v62, %v58
    %vm71 = vcmp.lt.s32.totalorder %v63, %v58
    %vm72 = vcmp.lt.s32.totalorder %v64, %v58
    %vm73 = vcmp.lt.s32.totalorder %v65, %v58
    %vm74 = vcmp.lt.s32.totalorder %v66, %v58
    %vm75 = vcmp.lt.s32.totalorder %v67, %v58
    %v76 = vld [vmem:[#allocation3] sm:$0x3]
    %v77 = vld [vmem:[#allocation3 + $0x2] sm:$0x3]
    %v78 = vld [vmem:[#allocation3 + $0x4] sm:$0x3]
    %v79 = vld [vmem:[#allocation3 + $0x6] sm:$0x3]
    %v80 = vld [vmem:[#allocation3 + $0x8] sm:$0x3]
    %v81 = vld [vmem:[#allocation3 + $0xa] sm:$0x3]
    %v82 = vld [vmem:[#allocation3 + $0xc] sm:$0x3]
    %v83 = vld [vmem:[#allocation3 + $0xe] sm:$0x3]
    %v84 = vsel %vm68, 1, 0
    %v85 = vsel %vm69, 1, 0
    %v86 = vsel %vm70, 1, 0
    %v87 = vsel %vm71, 1, 0
    %v88 = vsel %vm72, 1, 0
    %v89 = vsel %vm73, 1, 0
    %v90 = vsel %vm74, 1, 0
    %v91 = vsel %vm75, 1, 0
    %92 = vset.pattern.permute.xlu0 0
    %93 = vperm.xlu0 %92, %v84
    %v94 = vpop.permute.xlu0 %93
    %95 = vset.pattern.permute.xlu0 0
    %96 = vperm.xlu0 %95, %v85
    %v97 = vpop.permute.xlu0 %96
    %98 = vset.pattern.permute.xlu0 0
    %99 = vperm.xlu0 %98, %v86
    %v100 = vpop.permute.xlu0 %99
    %101 = vset.pattern.permute.xlu0 0
    %102 = vperm.xlu0 %101, %v87
    %v103 = vpop.permute.xlu0 %102
    %104 = vset.pattern.permute.xlu0 0
    %105 = vperm.xlu0 %104, %v88
    %v106 = vpop.permute.xlu0 %105
    %107 = vset.pattern.permute.xlu0 0
    %108 = vperm.xlu0 %107, %v89
    %v109 = vpop.permute.xlu0 %108
    %110 = vset.pattern.permute.xlu0 0
    %111 = vperm.xlu0 %110, %v90
    %v112 = vpop.permute.xlu0 %111
    %113 = vset.pattern.permute.xlu0 0
    %114 = vperm.xlu0 %113, %v91
    %v115 = vpop.permute.xlu0 %114
    %vm116 = vcmp.eq.s32.totalorder %v94, 1
    %vm117 = vcmp.eq.s32.totalorder %v97, 1
    %vm118 = vcmp.eq.s32.totalorder %v100, 1
    %vm119 = vcmp.eq.s32.totalorder %v103, 1
    %vm120 = vcmp.eq.s32.totalorder %v106, 1
    %vm121 = vcmp.eq.s32.totalorder %v109, 1
    %vm122 = vcmp.eq.s32.totalorder %v112, 1
    %vm123 = vcmp.eq.s32.totalorder %v115, 1
    %v124 = vsel %vm116, %v76, 0.0
    %v125 = vsel %vm117, %v77, 0.0
    %v126 = vsel %vm118, %v78, 0.0
    %v127 = vsel %vm119, %v79, 0.0
    %v128 = vsel %vm120, %v80, 0.0
    %v129 = vsel %vm121, %v81, 0.0
    %v130 = vsel %vm122, %v82, 0.0
    %v131 = vsel %vm123, %v83, 0.0
    %v132 = vld [vmem:[#allocation2] sm:$0x3]
    %vm133 = vcmask 254976
    %v134 = vsel %vm133, %v124, 0.0
    %v135 = vsel %vm133, %v125, 0.0
    %v136 = vadd.f32 %v134, %v135
    %v137 = vsel %vm133, %v126, 0.0
    %v138 = vadd.f32 %v136, %v137
    %v139 = vsel %vm133, %v127, 0.0
    %v140 = vadd.f32 %v138, %v139
    %v141 = vsel %vm133, %v128, 0.0
    %v142 = vadd.f32 %v140, %v141
    %v143 = vsel %vm133, %v129, 0.0
    %v144 = vadd.f32 %v142, %v143
    %v145 = vsel %vm133, %v130, 0.0
    %v146 = vadd.f32 %v144, %v145
    %v147 = vsel %vm133, %v131, 0.0
    %v148 = vadd.f32 %v146, %v147
    %v149 = vadd.f32 %v132, %v148
    %150 = vst.msk [vmem:[#allocation2] sm:$0x3] %vm133, %v149
    // Predicated region
    $region30: #{tpu_custom_call.1} parent=1 // pred_check
      %p151 = pneg %p52
    $region31: #{tpu_custom_call.1} parent=1 // pred_check_branch
      %153 = sbr.rel (%p151) target = $region33
    $region32: #{tpu_custom_call.1} parent=1 // pred_region
      %v154 = vcvt.s32.f32 %v58
      %v155 = vmax.f32 %v154, 1e-09
      %v156 = vld [vmem:[#allocation2] sm:$0x3]
      %158 = vset.pattern.permute.xlu0 0
      %159 = vperm.xlu0 %158, %v155
      %v160 = vpop.permute.xlu0 %159
      %v162 = vrcp.pop %v160
      %v163 = vmul.f32 %v160, %v162
      %v164 = vsub.f32 1.0, %v163
      %v165 = vmul.f32 %v162, %v164
      %v166 = vadd.f32 %v162, %v165
      %vm167 = vweird.f32 %v160
      %vm168 = vweird.f32 %v162
      %vm169 = vmor %vm167, %vm168
      %v170 = vsel %vm169, %v162, %v166
      %v171 = vand.u32 2147483647, %v160
      %vm172 = vcmp.eq.f32.partialorder %v171, 8.507059e+37
      %v173 = vand.u32 %v160, 2147483648
      %v174 = vor.u32 1.1754944e-38, %v173
      %v175 = vsel %vm172, %v174, %v170
      %v176 = vmul.f32 %v156, %v175
      %v177 = vld [vmem:[#allocation6] sm:$0xff]
      %v178 = vld [vmem:[#allocation6 + $0x8] sm:$0xff]
      %v179 = vld [vmem:[#allocation6 + $0x10] sm:$0xff]
      %v180 = vld [vmem:[#allocation6 + $0x18] sm:$0xff]
      %vm181 = vcmask 261120
      %v183 = vsel %vm181, %v176, 0
      %185 = vmatpush.msra.mxu0 0.0
      %186 = vmatpush.msra.mxu0 0.0
      %187 = vmatpush.msra.mxu0 0.0
      %188 = vmatpush.msra.mxu0 0.0
      %189 = vmatpush.msra.mxu0 0.0
      %190 = vmatpush.msra.mxu0 0.0
      %191 = vmatpush.msra.mxu0 0.0
      %192 = vmatpush.msra.mxu0 0.0
      %193 = vmatpush.msra.mxu0 0.0
      %194 = vmatpush.msra.mxu0 0.0
      %195 = vmatpush.msra.mxu0 0.0
      %196 = vmatpush.msra.mxu0 0.0
      %197 = vmatpush.msra.mxu0 %v180
      %198 = vmatpush.msra.mxu0 %v179
      %199 = vmatpush.msra.mxu0 %v178
      %200 = vmatpush.msra.mxu0 %v177
      %201 = vmatmul.f32.gmra.mxu0 %v183
      %v202 = vpop.f32.mrf.mxu0
      %v203 = vadd.f32 0.0, %v202
      %204 = vdwg.mxu0
      %205 = vst [vmem:[#allocation8] sm:$0x3] %v203
      %v206 = vlaneseq
      %v207 = vand.u32 %v206, 127
      %vm208 = vcmp.lt.s32.totalorder %v207, 4
      %v209 = vsel %vm208, %v203, -1e+30
      %vm210 = vcmask 1041408
      %v211 = vsel %vm210, %v209, -inf
      %212 = vmax.xlane.f32.xlu0 %v211
      %v213 = vpop.xlane.xlu0 %212
      %v214 = vsub.f32 %v209, %v213
      %v215 = vmul.f32 %v214, 1.442695
      %v216 = vpow.pop %v215
      %v217 = vsel %vm210, %v216, 0.0
      %218 = vadd.xlane.f32.xlu0 %v217
      %v219 = vpop.xlane.xlu0 %218
      %v220 = vlog2.pop %v219
      %v221 = vmul.f32 %v220, 0.6931472
      %v222 = vadd.f32 %v213, %v221
      %v223 = vld [vmem:[%s2] sm:$0x3]
      %224 = vset.pattern.permute.xlu0 0
      %225 = vperm.xlu0 %224, %v223
      %v226 = vpop.permute.xlu0 %225
      %vm227 = vcmp.eq.s32.totalorder %v207, %v226
      %v228 = vsel %vm227, %v209, 0.0
      %v229 = vsel %vm210, %v228, 0.0
      %230 = vadd.xlane.f32.xlu0 %v229
      %v231 = vpop.xlane.xlu0 %230
      %vm232 = vcmp.ne.s32.totalorder %v223, 4294967196
      %v233 = vsub.f32 %v222, %v231
      %v234 = vsel %vm232, %v233, 0.0
      %vm235 = vcmask 1024
      %236 = vst.msk [vmem:[%s5] sm:$0x3] %vm235, %v234
    $region33: #{tpu_custom_call.1} parent=1 // pred_fallthru
      _
    // Predicated region
    $region34: #{tpu_custom_call.1} parent=1 // pred_check
      _
    $region35: #{tpu_custom_call.1} parent=1 // pred_check_branch
      %238 = sbr.rel (0) target = $region37
    $region36: #{tpu_custom_call.1} parent=1 // pred_region
      %240 = vsyncadd [#allocation5], 0
      %s242 = sshll.u32 [#allocation8], 4
      %s243 = int_to_ptr.vmem [resolvable:$true] %s242
      %s244 = sshll.u32 %s4, 4
      %s245 = int_to_ptr.hbm [resolvable:$true] %s244
      %247 = dma.vmem_to_hbm [thread:$0]  %s243, 32, %s245, [#allocation5]
    $region37: #{tpu_custom_call.1} parent=1 // pred_fallthru
      _
    // Predicated region
    $region38: #{tpu_custom_call.1} parent=1 // pred_check
      _
    $region39: #{tpu_custom_call.1} parent=1 // pred_check_branch
      %249 = sbr.rel (0) target = $region41
    $region40: #{tpu_custom_call.1} parent=1 // pred_region
      _
    $region41: #{tpu_custom_call.1} parent=1 // pred_fallthru
      _
    // Predicated region
    $region42: #{tpu_custom_call.1} parent=1 // pred_check
      _
    $region43: #{tpu_custom_call.1} parent=1 // pred_check_branch
      %251 = sbr.rel (0) target = $region45
    $region44: #{tpu_custom_call.1} parent=1 // pred_region
      %253 = dma.done [#allocation5], 32
    $region45: #{tpu_custom_call.1} parent=1 // pred_fallthru
      _
    // Predicated region
    $region46: #{tpu_custom_call.1} parent=1 // pred_check
      _
    $region47: #{tpu_custom_call.1} parent=1 // pred_check_branch
      %255 = sbr.rel (0) target = $region49
    $region48: #{tpu_custom_call.1} parent=1 // pred_region
      _
    $region49: #{tpu_custom_call.1} parent=1 // pred_fallthru
      _
    %256 = vsyncpa [#allocation4], 1
    %257 = vsyncpa [#allocation7], 1
    %258 = vsyncpa [#allocation5], 1

</llo_original>
